<compile_context>
chip_gen: v5e
topology: v5e:2x2
jax: 0.10.0
libtpu: 0.0.40
codegen_flags: <defaults>
</compile_context>

<pallas_src>
import functools

import jax
import jax.numpy as jnp
from jax.experimental import pallas as pl
from jax.experimental.pallas import tpu as pltpu


def _int_pow(t, n):
    """t**n for integer n >= 1 using only VPU multiplies (no EUP)."""
    result = None
    base = t
    while n > 0:
        if n & 1:
            result = base if result is None else result * base
        n >>= 1
        if n:
            base = base * base
    return result


def _log_inverse_kernel(x_ref, o_ref, *, k):
    x = x_ref[...].astype(jnp.float32)
    # t = ln(1/x + 1): reciprocal (EUP) + log (EUP).
    # TODO(synk): jnp.log1p(1/x) would be more accurate for large x but may
    # not match the PyTorch formula bit-for-bit; keep log(1/x + 1).
    t = jnp.log(1.0 / x + 1.0)

    k_int = int(k)
    k_is_int = float(k) == k_int
    if k_is_int and k_int == 0:
        y = jnp.ones_like(t)
    elif k_is_int and 0 < abs(k_int) <= 64:
        # t**(-k) for integer k: approx EUP reciprocal + 2 Newton steps
        # (VALU-only, restores full f32 accuracy), then binary powering with
        # VPU multiplies.  Keeps EUP pushes at 3/element.
        if k_int > 0:
            r = pl.reciprocal(t, approx=True)
            r = r * (2.0 - t * r)          # Newton refinement #1
            r = r * (2.0 - t * r)          # Newton refinement #2 (~f32 exact)
            y = _int_pow(r, k_int)
        else:
            y = _int_pow(t, -k_int)
    else:
        # General (non-integer) k: explicit exp(-k * log(t)).
        y = jnp.exp(jnp.float32(-k) * jnp.log(t))

    o_ref[...] = y.astype(o_ref.dtype)


def _round_up(a, b):
    return ((a + b - 1) // b) * b


def _vmem_capacity_bytes():
    try:
        info = pltpu.get_tpu_info()
        cap = int(getattr(info, "vmem_capacity_bytes", 0))
        if cap > 0:
            return cap
    except Exception:
        pass
    return 64 << 20  # conservative default (v7x per-TensorCore VMEM)


def _num_tensorcores():
    # Grid axes marked "parallel" shard across TensorCores: 2 per chip on v7x
    # (and megacore v4/v5p), 1 on v5e/v6e.
    try:
        kind = jax.devices()[0].device_kind.lower()
    except Exception:
        return 1
    if "v7" in kind or "v4" in kind or "v5p" in kind:
        return 2
    return 1


def log_inverse(x, k, *, tile_rows=8192):
    """Elementwise ln(1/x + 1)**(-k). Any shape / float dtype.

    Note: k is baked in at trace time; changing k recompiles the kernel.
    """
    orig_shape = x.shape
    orig_dtype = x.dtype
    total = x.size
    lanes = 128

    if total == 0:
        return x

    kernel = functools.partial(_log_inverse_kernel, k=float(k))
    itemsize = jnp.dtype(orig_dtype).itemsize

    # dtype-aware sublane rounding: bf16 packs 2 rows/sublane (->16), 8-bit 4
    # rows (->32); keeps blocks on whole packed (8,128) tiles.
    sub = 8 * max(1, 4 // itemsize)

    # Generation-aware VMEM budget for the double-buffered (in+out) pipeline;
    # leaves headroom for compiler scratch (v7x has only 64 MiB/TC).
    vmem_cap = _vmem_capacity_bytes()
    pipeline_budget = min(vmem_cap // 3, 32 << 20)
    bytes_per_row = lanes * 2 * itemsize          # one row of input + output
    max_tr = max(sub, (pipeline_budget // (2 * bytes_per_row)) // sub * sub)

    n_tc = _num_tensorcores()

    compiler_params = pltpu.CompilerParams(
        dimension_semantics=("parallel",),
        vmem_limit_bytes=int(min(vmem_cap // 2, 48 << 20)),
    )
    cost = pl.CostEstimate(
        flops=8 * total,
        transcendentals=3 * total,
        bytes_accessed=2 * total * itemsize,
    )

    if total % lanes == 0:
        # Fast path: free contiguous reshape to a lane-dense (rows, 128) view.
        rows = total // lanes
        x2d = x.reshape(rows, lanes)

        if rows <= sub:
            tr = rows                              # single tiny full-dim block
        else:
            tr_cap = min(_round_up(tile_rows, sub), max_tr)
            nblk = pl.cdiv(rows, tr_cap)
            # On multi-TC chips, split non-trivial work (>~1 MiB f32) into an
            # even number of near-equal blocks so both cores finish together;
            # on single-TC v5e/v6e keep one full-size block when it fits.
            if n_tc > 1 and rows > 2048:
                nblk = _round_up(max(nblk, n_tc), n_tc)
            tr = min(_round_up(pl.cdiv(rows, nblk), sub), _round_up(rows, sub))
        grid = (pl.cdiv(rows, tr),)

        out2d = pl.pallas_call(
            kernel,
            out_shape=jax.ShapeDtypeStruct((rows, lanes), orig_dtype),
            grid_spec=pltpu.PrefetchScalarGridSpec(
                num_scalar_prefetch=0,
                grid=grid,
                in_specs=[pl.BlockSpec((tr, lanes), lambda i: (i, 0))],
                out_specs=pl.BlockSpec((tr, lanes), lambda i: (i, 0)),
            ),
            compiler_params=compiler_params,
            cost_estimate=cost,
        )(x2d)
        return out2d.reshape(orig_shape)

    # Fallback (size not a multiple of 128): run directly over the flat 1-D
    # array; the final partial block's out-of-bounds input region holds
    # garbage, but its (possibly NaN) results are discarded by the masked
    # store.  This avoids the old pad/concat + output-slice passes that
    # roughly doubled HBM traffic.
    # TODO(synk): 1-D blocks may use vregs less densely than (rows, 128); if
    # this path ever becomes hot, switch to aligned-prefix 2-D + jnp tail.
    x1d = jnp.ravel(x)
    tr = max(sub, min(_round_up(tile_rows, sub), max_tr))
    blk = tr * lanes
    if blk >= total:
        blk = _round_up(total, sub * lanes)        # single (partial) block
    grid = (pl.cdiv(total, blk),)

    out1d = pl.pallas_call(
        kernel,
        out_shape=jax.ShapeDtypeStruct((total,), orig_dtype),
        grid_spec=pltpu.PrefetchScalarGridSpec(
            num_scalar_prefetch=0,
            grid=grid,
            in_specs=[pl.BlockSpec((blk,), lambda i: (i,))],
            out_specs=pl.BlockSpec((blk,), lambda i: (i,)),
        ),
        compiler_params=compiler_params,
        cost_estimate=cost,
    )(x1d)
    return out1d.reshape(orig_shape)


if __name__ == "__main__":
    # logInverse has a single hyperparameter k (no learned weights).
    k = 2.0

    key = jax.random.PRNGKey(0)
    # Small NCHW input, strictly positive so log(1/x + 1) is well-defined
    # (matches typical use of this module on non-negative activations).
    x = jax.random.uniform(
        key, (2, 4, 16, 16), dtype=jnp.float32, minval=0.1, maxval=2.0
    )

    y = jax.block_until_ready(log_inverse(x, k))

    # Reference check in plain JAX (same formula as the PyTorch forward).
    y_ref = jnp.log(1.0 / x + 1.0) ** (-k)
    assert y.shape == x.shape and y.dtype == x.dtype
    assert jnp.allclose(y, y_ref, rtol=1e-5, atol=1e-6)

    print("KERNEL_OK")
</pallas_src>

<mosaic_0001>
module attributes {stable_mosaic.version = 11 : i64} {
  func.func @_log_inverse_kernel(%arg0: i32, %arg1: memref<16x128xf32, #tpu.memory_space<vmem>>, %arg2: memref<16x128xf32, #tpu.memory_space<vmem>>) attributes {dimension_semantics = [#tpu.dimension_semantics<parallel>], iteration_bounds = array<i64: 1>, scalar_prefetch = 0 : i64, scratch_operands = 0 : i64, tpu.core_type = #tpu.core_type<tc>, window_params = [{transform_indices = @transform_0, window_bounds = array<i64: 16, 128>}, {transform_indices = @transform_1, window_bounds = array<i64: 16, 128>}]} {
    %c0 = arith.constant 0 : index
    %c0_0 = arith.constant 0 : index
    %0 = vector.load %arg1[%c0, %c0_0] : memref<16x128xf32, #tpu.memory_space<vmem>>, vector<16x128xf32>
    %cst = arith.constant 1.000000e+00 : f32
    %1 = vector.broadcast %cst : f32 to vector<16x128xf32>
    %2 = arith.divf %1, %0 : vector<16x128xf32>
    %cst_1 = arith.constant 1.000000e+00 : f32
    %3 = vector.broadcast %cst_1 : f32 to vector<16x128xf32>
    %4 = arith.addf %2, %3 : vector<16x128xf32>
    %5 = math.log %4 : vector<16x128xf32>
    %6 = tpu.reciprocal %5 {approx = true} : vector<16x128xf32> -> vector<16x128xf32>
    %7 = arith.mulf %5, %6 : vector<16x128xf32>
    %cst_2 = arith.constant 2.000000e+00 : f32
    %8 = vector.broadcast %cst_2 : f32 to vector<16x128xf32>
    %9 = arith.subf %8, %7 : vector<16x128xf32>
    %10 = arith.mulf %6, %9 : vector<16x128xf32>
    %11 = arith.mulf %5, %10 : vector<16x128xf32>
    %cst_3 = arith.constant 2.000000e+00 : f32
    %12 = vector.broadcast %cst_3 : f32 to vector<16x128xf32>
    %13 = arith.subf %12, %11 : vector<16x128xf32>
    %14 = arith.mulf %10, %13 : vector<16x128xf32>
    %15 = arith.mulf %14, %14 : vector<16x128xf32>
    %c0_4 = arith.constant 0 : index
    %c0_5 = arith.constant 0 : index
    %16 = vector.load %arg2[%c0_4, %c0_5] : memref<16x128xf32, #tpu.memory_space<vmem>>, vector<16x128xf32>
    tpu.vector_store %arg2[%c0_4, %c0_5], %15 {strides = array<i32>} : memref<16x128xf32, #tpu.memory_space<vmem>>, vector<16x128xf32>,
    return
  }
  func.func @transform_0(%arg0: i32) -> (i32, i32) {
    %c0_i32 = arith.constant 0 : i32
    %c0_i32_0 = arith.constant 0 : i32
    return %arg0, %c0_i32 : i32, i32
  }
  func.func @transform_1(%arg0: i32) -> (i32, i32) {
    %c0_i32 = arith.constant 0 : i32
    %c0_i32_0 = arith.constant 0 : i32
    return %arg0, %c0_i32 : i32, i32
  }
}

</mosaic_0001>

<llo_original>
// kernel: tpu_custom_call.1
$region0: #{tpu_custom_call.1}
  #allocation0 [shape = 'u32[]', space=smem, size = 0x4, offset = 0x4, fixed_abs, tag = 'smem constant byte address 0x4 - core index']
  #allocation1 [shape = 'u32[72,128]{1,0:T(1,128)}', space=vmem, size = 0x9000, scoped, tag = 'internal scratch']
  %s0 = inlined_call_operand.hbm [shape: f32[16,128], index: 0, kind: input, shape index: {}]
  %s1 = inlined_call_operand.hbm [shape: f32[16,128], index: 1, kind: output, shape index: {}]
  %s2 = sld [smem:[#allocation0]]
  $region18: #{tpu_custom_call.1} parent=0
    _
  %s4 = ssub.s32 1, %s2
  %s5 = scalar_select 0, %s4, %s2
  $region1: #{tpu_custom_call.1} parent=0
    #allocation2 [shape = 'u8[8192]{0}', space=vmem, size = 0x2000, scoped, tag = 'input window, operand 0, single buffered']
    #allocation3 [shape = 's32[1]{0}', space=sflag, size = 0x4, scoped, tag = 'scoped memory for tpu_custom_call.1']
    #allocation4 [shape = 's32[1]{0}', space=sflag, size = 0x4, scoped, tag = 'scoped memory for tpu_custom_call.1']
    #allocation5 [shape = 'u8[8192]{0}', space=vmem, size = 0x2000, scoped, tag = 'output window, operand 0, single buffered']
    %6 = vsyncpa [#allocation3], 0
    %7 = vsyncpa [#allocation4], 0
    // Predicated region
    $region2: #{tpu_custom_call.1} parent=1 // pred_check
      _
    $region3: #{tpu_custom_call.1} parent=1 // pred_check_branch
      %9 = sbr.rel (0) target = $region5
    $region4: #{tpu_custom_call.1} parent=1 // pred_region
      %11 = vsyncadd [#allocation3], 0
      %s12 = sshll.u32 %s0, 4
      %s13 = int_to_ptr.hbm [resolvable:$true] %s12
      %s14 = sshll.u32 [#allocation2], 4
      %s15 = int_to_ptr.vmem [resolvable:$true] %s14
      %20 = dma.hbm_to_vmem [thread:$0]  %s13, 256, %s15, [#allocation3], 128, 128, 8
    $region5: #{tpu_custom_call.1} parent=1 // pred_fallthru
      _
    // Predicated region
    $region6: #{tpu_custom_call.1} parent=1 // pred_check
      _
    $region7: #{tpu_custom_call.1} parent=1 // pred_check_branch
      %22 = sbr.rel (0) target = $region9
    $region8: #{tpu_custom_call.1} parent=1 // pred_region
      %24 = dma.done [#allocation3], 256
    $region9: #{tpu_custom_call.1} parent=1 // pred_fallthru
      _
    %v25 = vld [vmem:[#allocation2] sm:$0xff]
    %v26 = vld [vmem:[#allocation2 + $0x8] sm:$0xff]
    %v27 = vrcp.pop %v25
    %v28 = vmul.f32 %v25, %v27
    %v29 = vsub.f32 1.0, %v28
    %v30 = vmul.f32 %v27, %v29
    %v31 = vadd.f32 %v27, %v30
    %vm32 = vweird.f32 %v25
    %vm33 = vweird.f32 %v27
    %vm34 = vmor %vm32, %vm33
    %v35 = vsel %vm34, %v27, %v31
    %v36 = vand.u32 2147483647, %v25
    %vm37 = vcmp.eq.f32.partialorder %v36, 8.507059e+37
    %v38 = vand.u32 %v25, 2147483648
    %v39 = vor.u32 1.1754944e-38, %v38
    %v40 = vsel %vm37, %v39, %v35
    %v41 = vmul.f32 1.0, %v40
    %v42 = vrcp.pop %v26
    %v43 = vmul.f32 %v26, %v42
    %v44 = vsub.f32 1.0, %v43
    %v45 = vmul.f32 %v42, %v44
    %v46 = vadd.f32 %v42, %v45
    %vm47 = vweird.f32 %v26
    %vm48 = vweird.f32 %v42
    %vm49 = vmor %vm47, %vm48
    %v50 = vsel %vm49, %v42, %v46
    %v51 = vand.u32 2147483647, %v26
    %vm52 = vcmp.eq.f32.partialorder %v51, 8.507059e+37
    %v53 = vand.u32 %v26, 2147483648
    %v54 = vor.u32 1.1754944e-38, %v53
    %v55 = vsel %vm52, %v54, %v50
    %v56 = vmul.f32 1.0, %v55
    %v57 = vadd.f32 %v41, 1.0
    %v58 = vadd.f32 %v56, 1.0
    %v59 = vlog2.pop %v57
    %v60 = vmul.f32 %v59, 0.6931472
    %v61 = vlog2.pop %v58
    %v62 = vmul.f32 %v61, 0.6931472
    %v63 = vrcp.pop %v60
    %v64 = vrcp.pop %v62
    %v65 = vmul.f32 %v60, %v63
    %v66 = vmul.f32 %v62, %v64
    %v67 = vsub.f32 2.0, %v65
    %v68 = vsub.f32 2.0, %v66
    %v69 = vmul.f32 %v63, %v67
    %v70 = vmul.f32 %v64, %v68
    %v71 = vmul.f32 %v60, %v69
    %v72 = vmul.f32 %v62, %v70
    %v73 = vsub.f32 2.0, %v71
    %v74 = vsub.f32 2.0, %v72
    %v75 = vmul.f32 %v69, %v73
    %v76 = vmul.f32 %v70, %v74
    %v77 = vmul.f32 %v75, %v75
    %v78 = vmul.f32 %v76, %v76
    %79 = vst [vmem:[#allocation5] sm:$0xff] %v77
    %80 = vst [vmem:[#allocation5 + $0x8] sm:$0xff] %v78
    // Predicated region
    $region10: #{tpu_custom_call.1} parent=1 // pred_check
      _
    $region11: #{tpu_custom_call.1} parent=1 // pred_check_branch
      %82 = sbr.rel (0) target = $region13
    $region12: #{tpu_custom_call.1} parent=1 // pred_region
      %84 = vsyncadd [#allocation4], 0
      %s85 = sshll.u32 [#allocation5], 4
      %s86 = int_to_ptr.vmem [resolvable:$true] %s85
      %s87 = sshll.u32 %s1, 4
      %s88 = int_to_ptr.hbm [resolvable:$true] %s87
      %93 = dma.vmem_to_hbm [thread:$0]  %s86, 256, %s88, [#allocation4], 128, 128, 8
    $region13: #{tpu_custom_call.1} parent=1 // pred_fallthru
      _
    // Predicated region
    $region14: #{tpu_custom_call.1} parent=1 // pred_check
      _
    $region15: #{tpu_custom_call.1} parent=1 // pred_check_branch
      %95 = sbr.rel (0) target = $region17
    $region16: #{tpu_custom_call.1} parent=1 // pred_region
      %97 = dma.done [#allocation4], 256
    $region17: #{tpu_custom_call.1} parent=1 // pred_fallthru
      _
    %98 = vsyncpa [#allocation3], 1
    %99 = vsyncpa [#allocation4], 1

</llo_original>
